<compile_context>
chip_gen: v5e
topology: v5e:2x2
jax: 0.10.0
libtpu: 0.0.40
codegen_flags: <defaults>
</compile_context>

<pallas_src>
import math
from functools import partial

import jax
import jax.numpy as jnp
from jax import lax
from jax.experimental import pallas as pl
from jax.experimental.pallas import tpu as pltpu

SQRT2 = 1.4142135623730951
LN_EPS = 1e-12

# Preferred tile sizes (sweep per generation in production).
TM_PREF = 1024
TN_PREF = 1024
# Large enough that BERT-base contractions (K = 768 hidden, 3072 FFN) are single-pass.
TK_PREF = 4096

_VMEM_LIMIT_CACHE = None


def _vmem_limit_bytes():
    """Generation-aware scoped-VMEM limit: ~3/4 of physical VMEM, capped at 100 MiB.
    v7x (64 MiB) -> 48 MiB; v5e/v6e (128 MiB) -> 96 MiB.  Falls back to 48 MiB."""
    global _VMEM_LIMIT_CACHE
    if _VMEM_LIMIT_CACHE is None:
        limit = 48 * 1024 * 1024
        try:
            cap = pltpu.get_tpu_info().vmem_capacity_bytes
            if cap:
                limit = min((int(cap) * 3) // 4, 100 * 1024 * 1024)
        except Exception:
            pass
        _VMEM_LIMIT_CACHE = limit
    return _VMEM_LIMIT_CACHE


def _pick_tile(dim, pref, mult):
    """Largest tile <= pref that is a multiple of `mult` and divides `dim`.
    Falls back to the full dim (a full-extent block is always legal)."""
    if dim <= pref:
        return dim
    t = (min(pref, dim) // mult) * mult
    while t >= mult:
        if dim % t == 0:
            return t
        t -= mult
    return dim
    # TODO(synk): on v7x also prefer tm such that M/tm is even for balanced 2-TC sharding.


def _compiler_params(semantics):
    return pltpu.CompilerParams(
        dimension_semantics=semantics,
        vmem_limit_bytes=_vmem_limit_bytes(),
    )


def _gelu_erf(y):
    # exact (erf) GELU as used by BERT.
    # TODO(synk): on v5e a tanh-approx GELU (EUP slot) is cheaper if erf parity is not needed.
    return 0.5 * y * (1.0 + lax.erf(y / SQRT2))


def _layernorm_rows(y, g, b, eps):
    mu = jnp.mean(y, axis=-1, keepdims=True)
    var = jnp.mean(jnp.square(y - mu), axis=-1, keepdims=True)
    return (y - mu) * lax.rsqrt(var + eps) * g + b


# ---------------------------------------------------------------------------
# Kernel 1: tiled matmul + bias (+ optional exact-erf GELU)
#   full-K path (no scratch / no reduction axis) and K-split accumulator fallback
# ---------------------------------------------------------------------------
def _matmul_bias_fullk_kernel(x_ref, w_ref, b_ref, o_ref, *, activation):
    y = jnp.dot(
        x_ref[...].astype(jnp.bfloat16),
        w_ref[...].astype(jnp.bfloat16),
        preferred_element_type=jnp.float32,
    ) + b_ref[...]
    if activation == "gelu":
        y = _gelu_erf(y)
    o_ref[...] = y.astype(o_ref.dtype)


def _matmul_bias_acc_kernel(x_ref, w_ref, b_ref, o_ref, acc_ref, *, activation):
    @pl.when(pl.program_id(2) == 0)
    def _init():
        acc_ref[...] = jnp.zeros_like(acc_ref)

    acc_ref[...] += jnp.dot(
        x_ref[...].astype(jnp.bfloat16),
        w_ref[...].astype(jnp.bfloat16),
        preferred_element_type=jnp.float32,
    )

    @pl.when(pl.program_id(2) == pl.num_programs(2) - 1)
    def _finalize():
        y = acc_ref[...] + b_ref[...]
        if activation == "gelu":
            y = _gelu_erf(y)
        o_ref[...] = y.astype(o_ref.dtype)


def matmul_bias(x, w, b, activation="none", out_dtype=jnp.float32):
    M, K = x.shape
    K2, N = w.shape
    assert K == K2
    tm = _pick_tile(M, TM_PREF, 8)
    tn = _pick_tile(N, TN_PREF, 128)
    tk = _pick_tile(K, TK_PREF, 128)
    b2 = b.reshape(1, N).astype(jnp.float32)

    if tk == K:
        return pl.pallas_call(
            partial(_matmul_bias_fullk_kernel, activation=activation),
            out_shape=jax.ShapeDtypeStruct((M, N), out_dtype),
            grid=(M // tm, N // tn),
            in_specs=[
                pl.BlockSpec((tm, K), lambda i, j: (i, 0)),
                pl.BlockSpec((K, tn), lambda i, j: (0, j)),
                pl.BlockSpec((1, tn), lambda i, j: (0, j)),
            ],
            out_specs=pl.BlockSpec((tm, tn), lambda i, j: (i, j)),
            compiler_params=_compiler_params(("parallel", "parallel")),
        )(x, w, b2)

    return pl.pallas_call(
        partial(_matmul_bias_acc_kernel, activation=activation),
        out_shape=jax.ShapeDtypeStruct((M, N), out_dtype),
        grid=(M // tm, N // tn, K // tk),
        in_specs=[
            pl.BlockSpec((tm, tk), lambda i, j, k: (i, k)),
            pl.BlockSpec((tk, tn), lambda i, j, k: (k, j)),
            pl.BlockSpec((1, tn), lambda i, j, k: (0, j)),
        ],
        out_specs=pl.BlockSpec((tm, tn), lambda i, j, k: (i, j)),
        scratch_shapes=[pltpu.VMEM((tm, tn), jnp.float32)],
        compiler_params=_compiler_params(("parallel", "parallel", "arbitrary")),
    )(x, w, b2)


# ---------------------------------------------------------------------------
# Kernel 2: tiled matmul + bias + residual-add + LayerNorm (fused epilogue)
#   LN reduces over the full hidden dim, so the N axis is kept whole per block.
# ---------------------------------------------------------------------------
def _mm_res_ln_fullk_kernel(x_ref, w_ref, b_ref, r_ref, g_ref, bb_ref, o_ref, *, eps):
    y = jnp.dot(
        x_ref[...].astype(jnp.bfloat16),
        w_ref[...].astype(jnp.bfloat16),
        preferred_element_type=jnp.float32,
    ) + b_ref[...] + r_ref[...]
    o_ref[...] = _layernorm_rows(y, g_ref[...], bb_ref[...], eps).astype(o_ref.dtype)


def _mm_res_ln_acc_kernel(x_ref, w_ref, b_ref, r_ref, g_ref, bb_ref, o_ref, acc_ref, *, eps):
    @pl.when(pl.program_id(1) == 0)
    def _init():
        acc_ref[...] = jnp.zeros_like(acc_ref)

    acc_ref[...] += jnp.dot(
        x_ref[...].astype(jnp.bfloat16),
        w_ref[...].astype(jnp.bfloat16),
        preferred_element_type=jnp.float32,
    )

    @pl.when(pl.program_id(1) == pl.num_programs(1) - 1)
    def _finalize():
        y = acc_ref[...] + b_ref[...] + r_ref[...]
        o_ref[...] = _layernorm_rows(y, g_ref[...], bb_ref[...], eps).astype(o_ref.dtype)


def matmul_bias_residual_layernorm(x, w, b, residual, gamma, beta, eps=LN_EPS):
    M, K = x.shape
    K2, N = w.shape
    assert K == K2
    vmem = _vmem_limit_bytes()
    # Bigger tm cuts weight re-streaming; keep headroom on v7x's 64 MiB VMEM.
    tm_pref = 1024 if vmem >= 80 * 1024 * 1024 else 512
    tm = _pick_tile(M, tm_pref, 8)
    tk = _pick_tile(K, TK_PREF, 128)
    b2 = b.reshape(1, N).astype(jnp.float32)
    g2 = gamma.reshape(1, N).astype(jnp.float32)
    bb2 = beta.reshape(1, N).astype(jnp.float32)

    if tk == K:
        return pl.pallas_call(
            partial(_mm_res_ln_fullk_kernel, eps=eps),
            out_shape=jax.ShapeDtypeStruct((M, N), jnp.float32),
            grid=(M // tm,),
            in_specs=[
                pl.BlockSpec((tm, K), lambda i: (i, 0)),
                pl.BlockSpec((K, N), lambda i: (0, 0)),
                pl.BlockSpec((1, N), lambda i: (0, 0)),
                pl.BlockSpec((tm, N), lambda i: (i, 0)),
                pl.BlockSpec((1, N), lambda i: (0, 0)),
                pl.BlockSpec((1, N), lambda i: (0, 0)),
            ],
            out_specs=pl.BlockSpec((tm, N), lambda i: (i, 0)),
            compiler_params=_compiler_params(("parallel",)),
        )(x, w, b2, residual, g2, bb2)

    return pl.pallas_call(
        partial(_mm_res_ln_acc_kernel, eps=eps),
        out_shape=jax.ShapeDtypeStruct((M, N), jnp.float32),
        grid=(M // tm, K // tk),
        in_specs=[
            pl.BlockSpec((tm, tk), lambda i, k: (i, k)),
            pl.BlockSpec((tk, N), lambda i, k: (k, 0)),
            pl.BlockSpec((1, N), lambda i, k: (0, 0)),
            pl.BlockSpec((tm, N), lambda i, k: (i, 0)),
            pl.BlockSpec((1, N), lambda i, k: (0, 0)),
            pl.BlockSpec((1, N), lambda i, k: (0, 0)),
        ],
        out_specs=pl.BlockSpec((tm, N), lambda i, k: (i, 0)),
        scratch_shapes=[pltpu.VMEM((tm, N), jnp.float32)],
        compiler_params=_compiler_params(("parallel", "arbitrary")),
    )(x, w, b2, residual, g2, bb2)


# ---------------------------------------------------------------------------
# Kernel 3: fused (word + positional + type) embedding add + LayerNorm
# ---------------------------------------------------------------------------
def _embed_layernorm_kernel(w_ref, p_ref, t_ref, g_ref, b_ref, o_ref, *, eps):
    y = w_ref[...] + p_ref[...] + t_ref[...]
    o_ref[...] = _layernorm_rows(y, g_ref[...], b_ref[...], eps)


def embed_layernorm(word, pos, type_row, gamma, beta, eps=LN_EPS):
    B, S, H = word.shape
    ts = _pick_tile(S, TM_PREF, 8)
    t2 = type_row.reshape(1, H).astype(jnp.float32)
    g2 = gamma.reshape(1, H).astype(jnp.float32)
    b2 = beta.reshape(1, H).astype(jnp.float32)
    return pl.pallas_call(
        partial(_embed_layernorm_kernel, eps=eps),
        out_shape=jax.ShapeDtypeStruct((B, S, H), jnp.float32),
        grid=(B, S // ts),
        in_specs=[
            pl.BlockSpec((pl.Squeezed(), ts, H), lambda b, s: (b, s, 0)),
            pl.BlockSpec((ts, H), lambda b, s: (s, 0)),
            pl.BlockSpec((1, H), lambda b, s: (0, 0)),
            pl.BlockSpec((1, H), lambda b, s: (0, 0)),
            pl.BlockSpec((1, H), lambda b, s: (0, 0)),
        ],
        out_specs=pl.BlockSpec((pl.Squeezed(), ts, H), lambda b, s: (b, s, 0)),
        compiler_params=_compiler_params(("parallel", "parallel")),
    )(word, pos, t2, g2, b2)


# ---------------------------------------------------------------------------
# Kernel 4: scaled-dot-product attention, per (batch, head-group), fused-QKV input
# ---------------------------------------------------------------------------
def _aligned_heads_per_block(num_heads, dh):
    """Smallest head group whose lane width (hpb*dh) is a multiple of 128, or None."""
    for hpb in range(1, num_heads + 1):
        if num_heads % hpb == 0 and (hpb * dh) % 128 == 0:
            return hpb
    return None


def _attention_kernel(q_ref, k_ref, v_ref, mb_ref, o_ref, *, dh, scale):
    hpb = q_ref.shape[-1] // dh
    mb = mb_ref[...]                       # (1, S) f32 additive mask bias
    q_all = q_ref[...] * scale             # bf16; fold 1/sqrt(dh) into q: O(S*dh)
    outs = []
    # Static unroll over heads: each head's (S,S) score/prob temporaries are consumed
    # (dead) before the next head starts; only the small (S,dh) context survives.
    # TODO(synk): for S >= ~1-2K switch to a flash-style online softmax with a KV grid axis.
    for h in range(hpb):
        sl = slice(h * dh, (h + 1) * dh)
        q = q_all[:, sl]
        k = k_ref[:, sl]
        v = v_ref[:, sl]
        # NT dot: contract dim 1 of both operands — no explicit K transpose (no XLU work).
        s = lax.dot_general(q, k, (((1,), (1,)), ((), ())),
                            preferred_element_type=jnp.float32) + mb
        s = s - jnp.max(s, axis=-1, keepdims=True)
        # TODO(synk): bf16 exp (EUP bf16 ~2x f32 on v6e/v7x) if softmax parity not required.
        p = jnp.exp(s)
        denom = jnp.sum(p, axis=-1, keepdims=True)
        ctx = jnp.dot(p.astype(jnp.bfloat16), v, preferred_element_type=jnp.float32)
        # Normalize after PV: O(S*dh) multiply instead of O(S^2); approx reciprocal on EUP.
        outs.append(ctx * pl.reciprocal(denom, approx=True))
    # Single full-lane (S, G) store — avoids masked sub-128-lane column stores.
    out = outs[0] if len(outs) == 1 else jnp.concatenate(outs, axis=-1)
    o_ref[...] = out.astype(o_ref.dtype)


def attention(qkv, mask_bias, *, num_heads):
    """qkv: (B, S, 3H) fused bf16 projection; returns bf16 (B, S, H) context."""
    B, S, H3 = qkv.shape
    H = H3 // 3
    dh = H // num_heads
    scale = 1.0 / math.sqrt(dh)
    hpb = _aligned_heads_per_block(num_heads, dh)
    mb_spec = pl.BlockSpec((pl.Squeezed(), 1, S), lambda b, hp: (b, 0, 0))
    out_shape = jax.ShapeDtypeStruct((B, S, H), jnp.bfloat16)

    if hpb is not None:
        # Fused path: three views into the same (B, S, 3H) tensor via block-index offsets
        # (Q blocks 0..ng-1, K blocks ng..2ng-1, V blocks 2ng..3ng-1). No XLA slices.
        G = hpb * dh
        ng = num_heads // hpb

        def mk_spec(off):
            return pl.BlockSpec((pl.Squeezed(), S, G),
                                lambda b, hp, off=off: (b, 0, hp + off))

        in_specs = [mk_spec(0), mk_spec(ng), mk_spec(2 * ng), mb_spec]
        operands = (qkv, qkv, qkv, mask_bias)
        grid = (B, ng)
        out_spec = pl.BlockSpec((pl.Squeezed(), S, G), lambda b, hp: (b, 0, hp))
    else:
        # Fallback for tiny / non-128-aligned hidden sizes: XLA slices (one extra copy),
        # all heads in one full-hidden block.
        G = H
        q = qkv[..., :H]
        k = qkv[..., H:2 * H]
        v = qkv[..., 2 * H:]
        spec = pl.BlockSpec((pl.Squeezed(), S, G), lambda b, hp: (b, 0, 0))
        in_specs = [spec, spec, spec, mb_spec]
        operands = (q, k, v, mask_bias)
        grid = (B, 1)
        out_spec = pl.BlockSpec((pl.Squeezed(), S, G), lambda b, hp: (b, 0, 0))

    return pl.pallas_call(
        partial(_attention_kernel, dh=dh, scale=scale),
        out_shape=out_shape,
        grid=grid,
        in_specs=in_specs,
        out_specs=out_spec,
        compiler_params=_compiler_params(("parallel", "parallel")),
    )(*operands)


# ---------------------------------------------------------------------------
# Parameter init (deterministic, synthetic — no checkpoint loading)
# ---------------------------------------------------------------------------
def init_params(key, *, vocab, max_pos, type_vocab, H, ffn, n_layers):
    def nrm_bf16(k, shape):
        # MXU-native bf16 weights; accumulation inside the kernels stays f32.
        # TODO(synk): fp8 weight storage on v7x (MXU fp8 path) pending numerics validation.
        return (0.02 * jax.random.normal(k, shape)).astype(jnp.bfloat16)

    def nrm_f32(k, shape):
        return (0.02 * jax.random.normal(k, shape)).astype(jnp.float32)

    keys = jax.random.split(key, 3 + n_layers)
    params = {
        "word_emb": nrm_f32(keys[0], (vocab, H)),
        "pos_emb": nrm_f32(keys[1], (max_pos, H)),
        "type_emb": nrm_f32(keys[2], (type_vocab, H)),
        "emb_ln_g": jnp.ones((H,), jnp.float32),
        "emb_ln_b": jnp.zeros((H,), jnp.float32),
        "layers": [],
    }
    for li in range(n_layers):
        ks = jax.random.split(keys[3 + li], 6)
        wq, wk, wv = nrm_bf16(ks[0], (H, H)), nrm_bf16(ks[1], (H, H)), nrm_bf16(ks[2], (H, H))
        params["layers"].append(
            {
                # fused QKV projection: one (H, 3H) matmul instead of three (H, H)
                "w_qkv": jnp.concatenate([wq, wk, wv], axis=1),
                "b_qkv": jnp.zeros((3 * H,), jnp.float32),
                "wo": nrm_bf16(ks[3], (H, H)), "bo": jnp.zeros((H,), jnp.float32),
                "ln1_g": jnp.ones((H,), jnp.float32),
                "ln1_b": jnp.zeros((H,), jnp.float32),
                "wi": nrm_bf16(ks[4], (H, ffn)), "bi": jnp.zeros((ffn,), jnp.float32),
                "wp": nrm_bf16(ks[5], (ffn, H)), "bp": jnp.zeros((H,), jnp.float32),
                "ln2_g": jnp.ones((H,), jnp.float32),
                "ln2_b": jnp.zeros((H,), jnp.float32),
            }
        )
    return params


# ---------------------------------------------------------------------------
# Encoder forward (mirrors PubMedBERTEncoder.forward semantics)
# ---------------------------------------------------------------------------
def pubmedbert_encoder(params, input_ids, attention_mask, *, num_heads):
    B, S = input_ids.shape
    H = params["word_emb"].shape[1]

    # Embeddings: gather is XLA glue; the positional/type adds + LayerNorm are fused
    # into one Pallas kernel (no materialized pre-LN embedding tensor).
    # TODO(synk): tokenizer / pretrained-weight loading (AutoModel.from_pretrained) has
    # no kernel equivalent — weights are synthetic and deterministic.
    # TODO(synk): token_type_ids fixed to 0 (matches BERT default when not provided).
    word = params["word_emb"][input_ids]                       # (B, S, H) f32
    x = embed_layernorm(word, params["pos_emb"][:S], params["type_emb"][0],
                        params["emb_ln_g"], params["emb_ln_b"]).reshape(B * S, H)

    # BERT-style additive attention mask bias, shape (B, 1, S)
    mask_bias = ((1.0 - attention_mask.astype(jnp.float32)) * -10000.0).reshape(B, 1, S)

    for lp in params["layers"]:
        # fused QKV projection, written bf16 (consumer is the MXU); no q/k/v slicing.
        qkv = matmul_bias(x, lp["w_qkv"], lp["b_qkv"], out_dtype=jnp.bfloat16)
        ctx = attention(qkv.reshape(B, S, 3 * H), mask_bias,
                        num_heads=num_heads).reshape(B * S, H)      # bf16

        # output projection: bias + residual + LayerNorm fused into the matmul epilogue
        x = matmul_bias_residual_layernorm(ctx, lp["wo"], lp["bo"], x,
                                           lp["ln1_g"], lp["ln1_b"])

        # FFN: up-projection + GELU fused (bf16 out); down-projection + bias + residual
        # + LayerNorm fused (f32 out, serves as next residual).
        h = matmul_bias(x, lp["wi"], lp["bi"], activation="gelu", out_dtype=jnp.bfloat16)
        x = matmul_bias_residual_layernorm(h, lp["wp"], lp["bp"], x,
                                           lp["ln2_g"], lp["ln2_b"])

    last_hidden_state = x.reshape(B, S, H)
    return {
        "cls_representation": last_hidden_state[:, 0, :],
        "full_sequence": last_hidden_state,
        "attention_mask": attention_mask,
    }


# ---------------------------------------------------------------------------
if __name__ == "__main__":
    # Small shapes; H=128 with 2 heads (dh=64) so the fused-QKV attention path
    # (128-lane head groups) is exercised.
    B, S, H, NUM_HEADS, FFN, N_LAYERS = 2, 8, 128, 2, 256, 2
    VOCAB, MAX_POS, TYPE_VOCAB = 100, 16, 2

    key = jax.random.PRNGKey(0)
    k_params, k_ids = jax.random.split(key)

    params = init_params(
        k_params, vocab=VOCAB, max_pos=MAX_POS, type_vocab=TYPE_VOCAB,
        H=H, ffn=FFN, n_layers=N_LAYERS,
    )

    input_ids = jax.random.randint(k_ids, (B, S), 0, VOCAB, dtype=jnp.int32)
    attention_mask = jnp.array(
        [[1, 1, 1, 1, 1, 1, 1, 1],
         [1, 1, 1, 1, 1, 1, 0, 0]], dtype=jnp.int32
    )

    out = pubmedbert_encoder(params, input_ids, attention_mask, num_heads=NUM_HEADS)
    jax.block_until_ready(out)

    assert out["cls_representation"].shape == (B, H)
    assert out["full_sequence"].shape == (B, S, H)
    assert out["attention_mask"].shape == (B, S)
    assert bool(jnp.all(jnp.isfinite(out["full_sequence"])))
    print("KERNEL_OK")
</pallas_src>

<mosaic_0001>
module attributes {stable_mosaic.version = 11 : i64} {
  func.func @_embed_layernorm_kernel(%arg0: i32, %arg1: i32, %arg2: memref<1x8x128xf32, #tpu.memory_space<vmem>>, %arg3: memref<8x128xf32, #tpu.memory_space<vmem>>, %arg4: memref<1x128xf32, #tpu.memory_space<vmem>>, %arg5: memref<1x128xf32, #tpu.memory_space<vmem>>, %arg6: memref<1x128xf32, #tpu.memory_space<vmem>>, %arg7: memref<1x8x128xf32, #tpu.memory_space<vmem>>) attributes {dimension_semantics = [#tpu.dimension_semantics<parallel>, #tpu.dimension_semantics<parallel>], iteration_bounds = array<i64: 2, 1>, scalar_prefetch = 0 : i64, scratch_operands = 0 : i64, tpu.core_type = #tpu.core_type<tc>, window_params = [{transform_indices = @transform_0, window_bounds = array<i64: 1, 8, 128>}, {transform_indices = @transform_1, window_bounds = array<i64: 8, 128>}, {pipeline_mode = #tpu.pipeline_mode<synchronous>, transform_indices = @transform_2, window_bounds = array<i64: 1, 128>}, {pipeline_mode = #tpu.pipeline_mode<synchronous>, transform_indices = @transform_3, window_bounds = array<i64: 1, 128>}, {pipeline_mode = #tpu.pipeline_mode<synchronous>, transform_indices = @transform_4, window_bounds = array<i64: 1, 128>}, {transform_indices = @transform_5, window_bounds = array<i64: 1, 8, 128>}]} {
    %c0 = arith.constant 0 : index
    %c0_0 = arith.constant 0 : index
    %c0_1 = arith.constant 0 : index
    %0 = vector.load %arg2[%c0, %c0_0, %c0_1] : memref<1x8x128xf32, #tpu.memory_space<vmem>>, vector<1x8x128xf32>
    %1 = vector.shape_cast %0 : vector<1x8x128xf32> to vector<8x128xf32>
    %c0_2 = arith.constant 0 : index
    %c0_3 = arith.constant 0 : index
    %2 = vector.load %arg3[%c0_2, %c0_3] : memref<8x128xf32, #tpu.memory_space<vmem>>, vector<8x128xf32>
    %3 = arith.addf %1, %2 : vector<8x128xf32>
    %c0_4 = arith.constant 0 : index
    %c0_5 = arith.constant 0 : index
    %4 = vector.load %arg4[%c0_4, %c0_5] : memref<1x128xf32, #tpu.memory_space<vmem>>, vector<1x128xf32>
    %5 = vector.broadcast %4 : vector<1x128xf32> to vector<8x128xf32>
    %6 = arith.addf %3, %5 : vector<8x128xf32>
    %c0_6 = arith.constant 0 : index
    %c0_7 = arith.constant 0 : index
    %7 = vector.load %arg5[%c0_6, %c0_7] : memref<1x128xf32, #tpu.memory_space<vmem>>, vector<1x128xf32>
    %c0_8 = arith.constant 0 : index
    %c0_9 = arith.constant 0 : index
    %8 = vector.load %arg6[%c0_8, %c0_9] : memref<1x128xf32, #tpu.memory_space<vmem>>, vector<1x128xf32>
    %cst = arith.constant dense<0.000000e+00> : vector<8xf32>
    %9 = vector.multi_reduction <add>, %6, %cst [1] : vector<8x128xf32> to vector<8xf32>
    %10 = vector.shape_cast %9 : vector<8xf32> to vector<8x1xf32>
    %cst_10 = arith.constant 1.280000e+02 : f32
    %11 = vector.broadcast %cst_10 : f32 to vector<8x1xf32>
    %12 = arith.divf %10, %11 : vector<8x1xf32>
    %13 = vector.broadcast %12 : vector<8x1xf32> to vector<8x128xf32>
    %14 = arith.subf %6, %13 : vector<8x128xf32>
    %15 = arith.mulf %14, %14 : vector<8x128xf32>
    %cst_11 = arith.constant dense<0.000000e+00> : vector<8xf32>
    %16 = vector.multi_reduction <add>, %15, %cst_11 [1] : vector<8x128xf32> to vector<8xf32>
    %17 = vector.shape_cast %16 : vector<8xf32> to vector<8x1xf32>
    %cst_12 = arith.constant 1.280000e+02 : f32
    %18 = vector.broadcast %cst_12 : f32 to vector<8x1xf32>
    %19 = arith.divf %17, %18 : vector<8x1xf32>
    %20 = vector.broadcast %12 : vector<8x1xf32> to vector<8x128xf32>
    %21 = arith.subf %6, %20 : vector<8x128xf32>
    %cst_13 = arith.constant 9.99999996E-13 : f32
    %22 = vector.broadcast %cst_13 : f32 to vector<8x1xf32>
    %23 = arith.addf %19, %22 : vector<8x1xf32>
    %24 = math.rsqrt %23 : vector<8x1xf32>
    %25 = vector.broadcast %24 : vector<8x1xf32> to vector<8x128xf32>
    %26 = arith.mulf %21, %25 : vector<8x128xf32>
    %27 = vector.broadcast %7 : vector<1x128xf32> to vector<8x128xf32>
    %28 = arith.mulf %26, %27 : vector<8x128xf32>
    %29 = vector.broadcast %8 : vector<1x128xf32> to vector<8x128xf32>
    %30 = arith.addf %28, %29 : vector<8x128xf32>
    %c0_14 = arith.constant 0 : index
    %c0_15 = arith.constant 0 : index
    %c0_16 = arith.constant 0 : index
    %31 = vector.load %arg7[%c0_14, %c0_15, %c0_16] : memref<1x8x128xf32, #tpu.memory_space<vmem>>, vector<1x8x128xf32>
    %32 = vector.shape_cast %31 : vector<1x8x128xf32> to vector<8x128xf32>
    %33 = vector.shape_cast %30 : vector<8x128xf32> to vector<1x8x128xf32>
    tpu.vector_store %arg7[%c0_14, %c0_15, %c0_16], %33 {strides = array<i32>} : memref<1x8x128xf32, #tpu.memory_space<vmem>>, vector<1x8x128xf32>,
    return
  }
  func.func @transform_0(%arg0: i32, %arg1: i32) -> (i32, i32, i32) {
    %c0_i32 = arith.constant 0 : i32
    %c0_i32_0 = arith.constant 0 : i32
    return %arg0, %arg1, %c0_i32 : i32, i32, i32
  }
  func.func @transform_1(%arg0: i32, %arg1: i32) -> (i32, i32) {
    %c0_i32 = arith.constant 0 : i32
    %c0_i32_0 = arith.constant 0 : i32
    return %arg1, %c0_i32 : i32, i32
  }
  func.func @transform_2(%arg0: i32, %arg1: i32) -> (i32, i32) {
    %c0_i32 = arith.constant 0 : i32
    %c0_i32_0 = arith.constant 0 : i32
    %c0_i32_1 = arith.constant 0 : i32
    return %c0_i32, %c0_i32_0 : i32, i32
  }
  func.func @transform_3(%arg0: i32, %arg1: i32) -> (i32, i32) {
    %c0_i32 = arith.constant 0 : i32
    %c0_i32_0 = arith.constant 0 : i32
    %c0_i32_1 = arith.constant 0 : i32
    return %c0_i32, %c0_i32_0 : i32, i32
  }
  func.func @transform_4(%arg0: i32, %arg1: i32) -> (i32, i32) {
    %c0_i32 = arith.constant 0 : i32
    %c0_i32_0 = arith.constant 0 : i32
    %c0_i32_1 = arith.constant 0 : i32
    return %c0_i32, %c0_i32_0 : i32, i32
  }
  func.func @transform_5(%arg0: i32, %arg1: i32) -> (i32, i32, i32) {
    %c0_i32 = arith.constant 0 : i32
    %c0_i32_0 = arith.constant 0 : i32
    return %arg0, %arg1, %c0_i32 : i32, i32, i32
  }
}

</mosaic_0001>

<llo_original>
// kernel: tpu_custom_call.1
$region0: #{tpu_custom_call.1}
  #allocation0 [shape = 'u32[]', space=smem, size = 0x4, offset = 0x4, fixed_abs, tag = 'smem constant byte address 0x4 - core index']
  #allocation1 [shape = 'u32[72,128]{1,0:T(1,128)}', space=vmem, size = 0x9000, scoped, tag = 'internal scratch']
  %s0 = inlined_call_operand.hbm [shape: f32[2,8,128], index: 0, kind: input, shape index: {}]
  %s1 = inlined_call_operand.hbm [shape: f32[8,128], index: 1, kind: input, shape index: {}]
  %s2 = inlined_call_operand.vmem [shape: f32[1,128], index: 2, kind: input, shape index: {}]
  %s3 = inlined_call_operand.vmem [shape: f32[1,128], index: 3, kind: input, shape index: {}]
  %s4 = inlined_call_operand.vmem [shape: f32[1,128], index: 4, kind: input, shape index: {}]
  %s5 = inlined_call_operand.hbm [shape: f32[2,8,128], index: 5, kind: output, shape index: {}]
  %s6 = sld [smem:[#allocation0]]
  $region61: #{tpu_custom_call.1} parent=0
    _
  %s8 = ssub.s32 1, %s6
  %s9 = scalar_select 0, %s8, %s6
  $region1: #{tpu_custom_call.1} parent=0
    #allocation2 [shape = 'u8[8192]{0}', space=vmem, size = 0x2000, scoped, tag = 'input window, operand 0']
    #allocation3 [shape = 's32[2]{0}', space=sflag, size = 0x8, scoped, tag = 'scoped memory for tpu_custom_call.1']
    #allocation4 [shape = 's32[2]{0}', space=sflag, size = 0x8, scoped, tag = 'scoped memory for tpu_custom_call.1']
    #allocation5 [shape = 'u8[4096]{0}', space=vmem, size = 0x1000, scoped, tag = 'input window, operand 1, single buffered']
    #allocation6 [shape = 's32[1]{0}', space=sflag, size = 0x4, scoped, tag = 'scoped memory for tpu_custom_call.1']
    #allocation7 [shape = 'u8[8192]{0}', space=vmem, size = 0x2000, scoped, tag = 'output window, operand 0']
    %10 = vsyncpa [#allocation3], 0
    %s11 = scalar_lea.sflag [#allocation3], 1
    %12 = vsyncpa %s11, 0
    %13 = vsyncpa [#allocation6], 0
    %14 = vsyncpa [#allocation4], 0
    %s15 = scalar_lea.sflag [#allocation4], 1
    %16 = vsyncpa %s15, 0
    loop: start=0, step=1, limit=4
    $region2: #{tpu_custom_call.1} parent=1 // loop_pre_header
      _
    $region3: #{tpu_custom_call.1} parent=1 // loop_header
      %s18 = sphi 0, %s22
      %p19 = scmp.ge.s32.totalorder %s18, 4
      %s25 = sphi 0, %s37
      %s26 = sphi 0, %s33
      %s27 = sphi 0, %s25
      %s28 = sphi 0, %s26
      %s29 = sphi 0, %s27
      %s30 = sphi 0, %s28
      %s42 = sphi 0, %s44
      %s45 = sphi 0, %s42
      %s46 = sphi 0, %s45
      %s62 = sphi 0, %s46
      %s68 = sphi 0, %s70
      %s71 = sphi 0, %s68
      %s72 = sphi 0, %s71
      %s88 = sphi 0, %s72
      %s92 = sphi 0, %s92
      %s94 = sphi 0, %s92
      %s95 = sphi 0, %s94
      %s109 = sphi 0, %s95
      %s113 = sphi 0, %s113
      %s115 = sphi 0, %s113
      %s116 = sphi 0, %s115
      %s130 = sphi 0, %s116
      %s134 = sphi 0, %s134
      %s136 = sphi 0, %s134
      %s137 = sphi 0, %s136
      %s151 = sphi 0, %s137
      %s159 = sphi 0, %s161
      %s162 = sphi 0, %s159
      %s163 = sphi 0, %s162
      %s179 = sphi 0, %s163
    $region4: #{tpu_custom_call.1} parent=1 // loop_header_branch
      %21 = sbr.rel (%p19) target = $region8
    $region5: #{tpu_custom_call.1} parent=1 // loop_body
      %s23 = ssub.s32 %s18, 1
      %s24 = ssub.s32 %s18, 2
      %s31 = sadd.s32 1, %s26
      %p32 = scmp.ge.s32.totalorder %s31, 1
      %s33 = scalar_select %p32, 0, %s31
      %s34 = sadd.s32 1, %s25
      %s35 = scalar_select %p32, %s34, %s25
      %p36 = scmp.ge.s32.totalorder %s35, 2
      %s37 = scalar_select %p36, 0, %s35
      %s38 = ssub.s32 %s25, %s37
      %s39 = ssub.s32 %s26, %s33
      %s40 = sor.u32 %s38, %s39
      %p41 = scmp.eq.s32.totalorder %s40, 0
      %s43 = sadd.s32 %s42, 1
      %s44 = scalar_select %p41, %s42, %s43
      %p47 = pneg %p41
      %p48 = scmp.eq.s32.totalorder %s18, 1
      %p49 = por %p47, %p48
      %p50 = scmp.ne.s32.totalorder %s42, %s45
      %p51 = scmp.eq.s32.totalorder %s18, 0
      %p52 = por %p50, %p51
      %p53 = scmp.ne.s32.totalorder %s42, %s45
      %p54 = scmp.eq.s32.totalorder %s23, 1
      %p55 = por %p53, %p54
      %p56 = scmp.ne.s32.totalorder %s45, %s46
      %p57 = scmp.eq.s32.totalorder %s23, 0
      %p58 = por %p56, %p57
      %p59 = scmp.ne.s32.totalorder %s45, %s46
      %p60 = scmp.eq.s32.totalorder %s24, 1
      %p61 = por %p59, %p60
      %p63 = scmp.ne.s32.totalorder %s46, %s62
      %p64 = scmp.eq.s32.totalorder %s24, 0
      %p65 = por %p63, %p64
      %s66 = ssub.s32 %s26, %s33
      %p67 = scmp.eq.s32.totalorder %s66, 0
      %s69 = sadd.s32 %s68, 1
      %s70 = scalar_select %p67, %s68, %s69
      %p73 = pneg %p67
      %p74 = scmp.eq.s32.totalorder %s18, 1
      %p75 = por %p73, %p74
      %p76 = scmp.ne.s32.totalorder %s68, %s71
      %p77 = scmp.eq.s32.totalorder %s18, 0
      %p78 = por %p76, %p77
      %p79 = scmp.ne.s32.totalorder %s68, %s71
      %p80 = scmp.eq.s32.totalorder %s23, 1
      %p81 = por %p79, %p80
      %p82 = scmp.ne.s32.totalorder %s71, %s72
      %p83 = scmp.eq.s32.totalorder %s23, 0
      %p84 = por %p82, %p83
      %p85 = scmp.ne.s32.totalorder %s71, %s72
      %p86 = scmp.eq.s32.totalorder %s24, 1
      %p87 = por %p85, %p86
      %p89 = scmp.ne.s32.totalorder %s72, %s88
      %p90 = scmp.eq.s32.totalorder %s24, 0
      %p91 = por %p89, %p90
      %s93 = sadd.s32 %s92, 1
      %p96 = scmp.eq.s32.totalorder %s18, 1
      %p97 = scmp.ne.s32.totalorder %s92, %s94
      %p98 = scmp.eq.s32.totalorder %s18, 0
      %p99 = por %p97, %p98
      %p100 = scmp.ne.s32.totalorder %s92, %s94
      %p101 = scmp.eq.s32.totalorder %s23, 1
      %p102 = por %p100, %p101
      %p103 = scmp.ne.s32.totalorder %s94, %s95
      %p104 = scmp.eq.s32.totalorder %s23, 0
      %p105 = por %p103, %p104
      %p106 = scmp.ne.s32.totalorder %s94, %s95
      %p107 = scmp.eq.s32.totalorder %s24, 1
      %p108 = por %p106, %p107
      %p110 = scmp.ne.s32.totalorder %s95, %s109
      %p111 = scmp.eq.s32.totalorder %s24, 0
      %p112 = por %p110, %p111
      %s114 = sadd.s32 %s113, 1
      %p117 = scmp.eq.s32.totalorder %s18, 1
      %p118 = scmp.ne.s32.totalorder %s113, %s115
      %p119 = scmp.eq.s32.totalorder %s18, 0
      %p120 = por %p118, %p119
      %p121 = scmp.ne.s32.totalorder %s113, %s115
      %p122 = scmp.eq.s32.totalorder %s23, 1
      %p123 = por %p121, %p122
      %p124 = scmp.ne.s32.totalorder %s115, %s116
      %p125 = scmp.eq.s32.totalorder %s23, 0
      %p126 = por %p124, %p125
      %p127 = scmp.ne.s32.totalorder %s115, %s116
      %p128 = scmp.eq.s32.totalorder %s24, 1
      %p129 = por %p127, %p128
      %p131 = scmp.ne.s32.totalorder %s116, %s130
      %p132 = scmp.eq.s32.totalorder %s24, 0
      %p133 = por %p131, %p132
      %s135 = sadd.s32 %s134, 1
      %p138 = scmp.eq.s32.totalorder %s18, 1
      %p139 = scmp.ne.s32.totalorder %s134, %s136
      %p140 = scmp.eq.s32.totalorder %s18, 0
      %p141 = por %p139, %p140
      %p142 = scmp.ne.s32.totalorder %s134, %s136
      %p143 = scmp.eq.s32.totalorder %s23, 1
      %p144 = por %p142, %p143
      %p145 = scmp.ne.s32.totalorder %s136, %s137
      %p146 = scmp.eq.s32.totalorder %s23, 0
      %p147 = por %p145, %p146
      %p148 = scmp.ne.s32.totalorder %s136, %s137
      %p149 = scmp.eq.s32.totalorder %s24, 1
      %p150 = por %p148, %p149
      %p152 = scmp.ne.s32.totalorder %s137, %s151
      %p153 = scmp.eq.s32.totalorder %s24, 0
      %p154 = por %p152, %p153
      %s155 = ssub.s32 %s25, %s37
      %s156 = ssub.s32 %s26, %s33
      %s157 = sor.u32 %s155, %s156
      %p158 = scmp.eq.s32.totalorder %s157, 0
      %s160 = sadd.s32 %s159, 1
      %s161 = scalar_select %p158, %s159, %s160
      %p164 = pneg %p158
      %p165 = scmp.eq.s32.totalorder %s18, 1
      %p166 = por %p164, %p165
      %p167 = scmp.ne.s32.totalorder %s159, %s162
      %p168 = scmp.eq.s32.totalorder %s18, 0
      %p169 = por %p167, %p168
      %p170 = scmp.ne.s32.totalorder %s159, %s162
      %p171 = scmp.eq.s32.totalorder %s23, 1
      %p172 = por %p170, %p171
      %p173 = scmp.ne.s32.totalorder %s162, %s163
      %p174 = scmp.eq.s32.totalorder %s23, 0
      %p175 = por %p173, %p174
      %p176 = scmp.ne.s32.totalorder %s162, %s163
      %p177 = scmp.eq.s32.totalorder %s24, 1
      %p178 = por %p176, %p177
      %p180 = scmp.ne.s32.totalorder %s163, %s179
      %p181 = scmp.eq.s32.totalorder %s24, 0
      %p182 = por %p180, %p181
      %p183 = scmp.le.s32.totalorder 1, %s18
      %p184 = scmp.lt.s32.totalorder %s18, 3
      %p185 = pnand %p183, %p184
      %p186 = pneg %p185
      // Predicated region
      $region9: #{tpu_custom_call.1} parent=5 // pred_check
        _
      $region10: #{tpu_custom_call.1} parent=5 // pred_check_branch
        %188 = sbr.rel (%p185) target = $region12
      $region11: #{tpu_custom_call.1} parent=5 // pred_region
        %s189 = ssub.s32 %s18, 1
        // Predicated region
        $region13: #{tpu_custom_call.1} parent=11 // pred_check
          %p190 = pneg %p84
        $region14: #{tpu_custom_call.1} parent=11 // pred_check_branch
          %192 = sbr.rel (%p190) target = $region16
        $region15: #{tpu_custom_call.1} parent=11 // pred_region
          %194 = vsyncadd [#allocation6], 0
          %s195 = smul.addr %s28, 8
          %s196 = scalar_lea.hbm %s1, %s195
          %s198 = sshll.u32 %s196, 4
          %s199 = int_to_ptr.hbm [resolvable:$true] %s198
          %s200 = sshll.u32 [#allocation5], 4
          %s201 = int_to_ptr.vmem [resolvable:$true] %s200
          %203 = dma.hbm_to_vmem [thread:$0]  %s199, 128, %s201, [#allocation6]
        $region16: #{tpu_custom_call.1} parent=11 // pred_fallthru
          _
        // Predicated region
        $region17: #{tpu_custom_call.1} parent=11 // pred_check
          %p204 = pneg %p105
        $region18: #{tpu_custom_call.1} parent=11 // pred_check_branch
          %206 = sbr.rel (%p204) target = $region20
        $region19: #{tpu_custom_call.1} parent=11 // pred_region
          _
        $region20: #{tpu_custom_call.1} parent=11 // pred_fallthru
          _
        // Predicated region
        $region21: #{tpu_custom_call.1} parent=11 // pred_check
          %p207 = pneg %p126
        $region22: #{tpu_custom_call.1} parent=11 // pred_check_branch
          %209 = sbr.rel (%p207) target = $region24
        $region23: #{tpu_custom_call.1} parent=11 // pred_region
          _
        $region24: #{tpu_custom_call.1} parent=11 // pred_fallthru
          _
        // Predicated region
        $region25: #{tpu_custom_call.1} parent=11 // pred_check
          %p210 = pneg %p147
        $region26: #{tpu_custom_call.1} parent=11 // pred_check_branch
          %212 = sbr.rel (%p210) target = $region28
        $region27: #{tpu_custom_call.1} parent=11 // pred_region
          _
        $region28: #{tpu_custom_call.1} parent=11 // pred_fallthru
          _
      $region12: #{tpu_custom_call.1} parent=5 // pred_fallthru
        _
      %p213 = scmp.lt.s32.totalorder %s18, 2
      // Predicated region
      $region29: #{tpu_custom_call.1} parent=5 // pred_check
        %p214 = pneg %p213
      $region30: #{tpu_custom_call.1} parent=5 // pred_check_branch
        %216 = sbr.rel (%p214) target = $region32
      $region31: #{tpu_custom_call.1} parent=5 // pred_region
        // Predicated region
        $region33: #{tpu_custom_call.1} parent=31 // pred_check
          %p217 = pneg %p52
        $region34: #{tpu_custom_call.1} parent=31 // pred_check_branch
          %219 = sbr.rel (%p217) target = $region36
        $region35: #{tpu_custom_call.1} parent=31 // pred_region
          %s220 = sand.u32 %s42, 1
          %s221 = scalar_lea.sflag [#allocation3], %s220
          %s222 = sand.u32 %s42, 1
          %s223 = smul.addr %s222, 8
          %s224 = scalar_lea.vmem [#allocation2], %s223
          %226 = vsyncadd %s221, 0
          %s227 = sadd.s32 %s26, %s25
          %s228 = smul.addr %s227, 8
          %s229 = scalar_lea.hbm %s0, %s228
          %s231 = sshll.u32 %s229, 4
          %s232 = int_to_ptr.hbm [resolvable:$true] %s231
          %s233 = sshll.u32 %s224, 4
          %s234 = int_to_ptr.vmem [resolvable:$true] %s233
          %236 = dma.hbm_to_vmem [thread:$0]  %s232, 128, %s234, %s221
        $region36: #{tpu_custom_call.1} parent=31 // pred_fallthru
          _
      $region32: #{tpu_custom_call.1} parent=5 // pred_fallthru
        _
      %p237 = scmp.le.s32.totalorder 1, %s18
      %p238 = scmp.lt.s32.totalorder %s18, 3
      %p239 = pnand %p237, %p238
      %p240 = pneg %p239
      // Predicated region
      $region37: #{tpu_custom_call.1} parent=5 // pred_check
        _
      $region38: #{tpu_custom_call.1} parent=5 // pred_check_branch
        %242 = sbr.rel (%p239) target = $region40
      $region39: #{tpu_custom_call.1} parent=5 // pred_region
        %s243 = ssub.s32 %s18, 1
        %s244 = sand.u32 %s45, 1
        %s245 = scalar_lea.sflag [#allocation3], %s244
        %s246 = sand.u32 %s45, 1
        %s247 = smul.addr %s246, 8
        %s248 = scalar_lea.vmem [#allocation2], %s247
        // Predicated region
        $region41: #{tpu_custom_call.1} parent=39 // pred_check
          %p249 = pneg %p58
        $region42: #{tpu_custom_call.1} parent=39 // pred_check_branch
          %251 = sbr.rel (%p249) target = $region44
        $region43: #{tpu_custom_call.1} parent=39 // pred_region
          %253 = dma.done %s245, 128
        $region44: #{tpu_custom_call.1} parent=39 // pred_fallthru
          _
        // Predicated region
        $region45: #{tpu_custom_call.1} parent=39 // pred_check
          %p254 = pneg %p84
        $region46: #{tpu_custom_call.1} parent=39 // pred_check_branch
          %256 = sbr.rel (%p254) target = $region48
        $region47: #{tpu_custom_call.1} parent=39 // pred_region
          %258 = dma.done [#allocation6], 128
        $region48: #{tpu_custom_call.1} parent=39 // pred_fallthru
          _
        %s259 = sand.u32 %s45, 1
        %s260 = scalar_lea.sflag [#allocation3], %s259
        %s261 = sand.u32 %s45, 1
        %s262 = smul.addr %s261, 8
        %s263 = scalar_lea.vmem [#allocation2], %s262
        %p264 = pneg %p58
        %p265 = pneg %p55
        %p266 = pneg %p84
        %p267 = pneg %p81
        %p268 = pneg %p105
        %p269 = pneg %p102
        %p270 = pneg %p126
        %p271 = pneg %p123
        %p272 = pneg %p147
        %p273 = pneg %p144
        %p274 = pneg %p175
        %p275 = pneg %p172
        %s276 = sand.u32 %s162, 1
        %s277 = scalar_lea.sflag [#allocation4], %s276
        %s278 = sand.u32 %s162, 1
        %s279 = smul.addr %s278, 8
        %s280 = scalar_lea.vmem [#allocation7], %s279
        %v281 = vld [vmem:[%s248] sm:$0xff]
        %v282 = vld [vmem:[#allocation5] sm:$0xff]
        %v283 = vadd.f32 %v281, %v282
        %v284 = vld [vmem:[%s2] sm:$0x1]
        %v286 = vperm.slane %v284, 0
        %v288 = vadd.f32 %v283, %v286
        %v289 = vld [vmem:[%s3] sm:$0x1]
        %v290 = vld [vmem:[%s4] sm:$0x1]
        %291 = vadd.xlane.f32.xlu0 %v288
        %v292 = vpop.xlane.xlu0 %291
        %v293 = vrcp.pop 128.0
        %v294 = vmul.f32 128.0, %v293
        %v295 = vsub.f32 1.0, %v294
        %v296 = vmul.f32 %v293, %v295
        %v297 = vadd.f32 %v293, %v296
        %vm298 = vweird.f32 %v293
        %v299 = vsel %vm298, %v293, %v297
        %v300 = vmul.f32 %v292, %v299
        %v301 = vsub.f32 %v288, %v300
        %v302 = vmul.f32 %v301, %v301
        %303 = vadd.xlane.f32.xlu0 %v302
        %v304 = vpop.xlane.xlu0 %303
        %v305 = vmul.f32 %v304, %v299
        %v306 = vadd.f32 %v305, 1e-12
        %v307 = vrsqrt.pop %v306
        %v308 = vmul.f32 %v307, %v306
        %v309 = vmul.f32 %v308, %v307
        %v310 = vmul.f32 0.5, %v309
        %v311 = vsub.f32 1.5, %v310
        %v312 = vmul.f32 %v307, %v311
        %vm313 = vweird.f32 %v306
        %vm314 = vweird.f32 %v307
        %vm315 = vmor %vm313, %vm314
        %v316 = vsel %vm315, %v307, %v312
        %v317 = vmul.f32 %v301, %v316
        %v319 = vperm.slane %v289, 0
        %v321 = vmul.f32 %v317, %v319
        %v323 = vperm.slane %v290, 0
        %v325 = vadd.f32 %v321, %v323
        %326 = vst [vmem:[%s280] sm:$0xff] %v325
        %s327 = sand.u32 %s162, 1
        %s328 = scalar_lea.sflag [#allocation4], %s327
        %s329 = sand.u32 %s162, 1
        %s330 = smul.addr %s329, 8
        %s331 = scalar_lea.vmem [#allocation7], %s330
        // Predicated region
        $region49: #{tpu_custom_call.1} parent=39 // pred_check
          %p332 = pneg %p172
        $region50: #{tpu_custom_call.1} parent=39 // pred_check_branch
          %334 = sbr.rel (%p332) target = $region52
        $region51: #{tpu_custom_call.1} parent=39 // pred_region
          %336 = vsyncadd %s328, 0
          %s337 = sadd.s32 %s28, %s27
          %s338 = smul.addr %s337, 8
          %s339 = scalar_lea.hbm %s5, %s338
          %s341 = sshll.u32 %s331, 4
          %s342 = int_to_ptr.vmem [resolvable:$true] %s341
          %s343 = sshll.u32 %s339, 4
          %s344 = int_to_ptr.hbm [resolvable:$true] %s343
          %346 = dma.vmem_to_hbm [thread:$0]  %s342, 128, %s344, %s328
        $region52: #{tpu_custom_call.1} parent=39 // pred_fallthru
          _
      $region40: #{tpu_custom_call.1} parent=5 // pred_fallthru
        _
      %p347 = scmp.le.s32.totalorder 2, %s18
      // Predicated region
      $region53: #{tpu_custom_call.1} parent=5 // pred_check
        %p348 = pneg %p347
      $region54: #{tpu_custom_call.1} parent=5 // pred_check_branch
        %350 = sbr.rel (%p348) target = $region56
      $region55: #{tpu_custom_call.1} parent=5 // pred_region
        %s351 = ssub.s32 %s18, 2
        // Predicated region
        $region57: #{tpu_custom_call.1} parent=55 // pred_check
          %p352 = pneg %p178
        $region58: #{tpu_custom_call.1} parent=55 // pred_check_branch
          %354 = sbr.rel (%p352) target = $region60
        $region59: #{tpu_custom_call.1} parent=55 // pred_region
          %s355 = sand.u32 %s163, 1
          %s356 = scalar_lea.sflag [#allocation4], %s355
          %s357 = sand.u32 %s163, 1
          %s358 = smul.addr %s357, 8
          %s359 = scalar_lea.vmem [#allocation7], %s358
          %361 = dma.done %s356, 128
        $region60: #{tpu_custom_call.1} parent=55 // pred_fallthru
          _
      $region56: #{tpu_custom_call.1} parent=5 // pred_fallthru
        _
    $region6: #{tpu_custom_call.1} parent=1 // loop_footer
      %s22 = sadd.s32 1, %s18
    $region7: #{tpu_custom_call.1} parent=1 // loop_footer_branch
      %17 = sbr.rel target = $region3
    $region8: #{tpu_custom_call.1} parent=1 // loop_exit
      _
    %362 = vsyncpa [#allocation3], 1
    %s363 = scalar_lea.sflag [#allocation3], 1
    %364 = vsyncpa %s363, 1
    %365 = vsyncpa [#allocation6], 1
    %366 = vsyncpa [#allocation4], 1
    %s367 = scalar_lea.sflag [#allocation4], 1
    %368 = vsyncpa %s367, 1

</llo_original>
